<compile_context>
chip_gen: v5e
topology: v5e:2x2
jax: 0.10.0
libtpu: 0.0.40
codegen_flags: <defaults>
</compile_context>

<pallas_src>
import functools

import jax
import jax.numpy as jnp
from jax import lax
from jax.experimental import pallas as pl
from jax.experimental.pallas import tpu as pltpu


def _upsample1d_kernel(w_ref, b_ref, x_ref, halo_ref, o_ref, *, mxu_dtype):
    # w_ref:    (4, C, C)    weight blocks [W1, W3, W2, W0] (see wrapper)
    # b_ref:    (1, 2C)      bias duplicated for the even/odd halves (f32)
    # x_ref:    (1, TL, C)   one L-tile of one batch element, channels-last
    # halo_ref: (1, 1, 2, C) row 0: x[tile_start-1], row 1: x[tile_end] (zero at edges)
    # o_ref:    (1, TL, 2C)  row m = [out[2m] | out[2m+1]]
    x = x_ref[0]                                     # (TL, C)
    halo = halo_ref[0, 0]                            # (2, C)
    tl = x.shape[0]

    # Shifted copies via the XLU roll slot; splice the cross-tile halo row in
    # with a broadcasted select (no concatenate copies of the full tile).
    x_prev = pltpu.roll(x, shift=1, axis=0)          # row m -> x[m-1] (row 0 wraps)
    x_next = pltpu.roll(x, shift=tl - 1, axis=0)     # row m -> x[m+1] (last row wraps)
    row = lax.broadcasted_iota(jnp.int32, (tl, 1), 0)
    x_prev = jnp.where(row == 0, halo[0:1, :], x_prev)
    x_next = jnp.where(row == tl - 1, halo[1:2, :], x_next)

    xm = x.astype(mxu_dtype)
    xpm = x_prev.astype(mxu_dtype)
    xnm = x_next.astype(mxu_dtype)

    # Four exact (TL,C)@(C,C) dots, f32 accumulation.
    y_even = jnp.dot(xm, w_ref[0], preferred_element_type=jnp.float32)
    y_even = y_even + jnp.dot(xpm, w_ref[1], preferred_element_type=jnp.float32)
    y_odd = jnp.dot(xm, w_ref[2], preferred_element_type=jnp.float32)
    y_odd = y_odd + jnp.dot(xnm, w_ref[3], preferred_element_type=jnp.float32)

    y = jnp.concatenate([y_even, y_odd], axis=-1) + b_ref[...]
    o_ref[0] = y.astype(o_ref.dtype)


def _physical_vmem_bytes():
    try:
        info = pltpu.get_tpu_info()
        v = getattr(info, "vmem_capacity_bytes", None)
        if v:
            return int(v)
    except Exception:
        pass
    return 64 * 1024 * 1024   # conservative fallback: v7x per-TensorCore VMEM


def _choose_tile_l(L, C, isz_x, isz_w, vmem_cap, target_rows=512):
    """Largest multiple-of-8 divisor of L under a VMEM-derived cap (target 512
    rows), after subtracting the resident weight/bias footprint.  If no divisor
    exists, return a padded-tile size (caller zero-pads L)."""
    resident = 2 * 4 * C * C * isz_w + 2 * 2 * C * 4 + (4 << 20)   # weights+bias+headroom
    per_row = 2 * 3 * C * isz_x                                     # dbl-buffered x + out
    avail = vmem_cap - resident
    cap = max(8, min(target_rows, avail // per_row)) if avail > 0 else 8
    cap = max(8, (cap // 8) * 8)

    best = None
    tl = 8
    lim = min(L, cap)
    while tl <= lim:
        if L % tl == 0:
            best = tl
        tl += 8
    if best is not None:
        return best
    return max(8, min(cap, ((L + 7) // 8) * 8))


def upsample1d_nlc(x_blc, weight, bias, *, tile_l=None, use_bf16_matmul=False):
    """ConvTranspose1d(dim, dim, 4, 2, 1) forward, channels-last I/O.

    x_blc:  (B, L, C)
    weight: (C_in, C_out, 4)   PyTorch ConvTranspose1d weight layout
    bias:   (C_out,)
    returns (B, 2L, C).  No wrapper transposes on this path.
    """
    B, L, C = x_blc.shape
    dtype = x_blc.dtype
    mxu_dtype = jnp.bfloat16 if use_bf16_matmul else dtype
    isz_x = jnp.dtype(dtype).itemsize
    isz_w = jnp.dtype(mxu_dtype).itemsize

    vmem_cap = max(int(0.7 * _physical_vmem_bytes()), 16 * 1024 * 1024)

    if tile_l is None:
        tile_l = _choose_tile_l(L, C, isz_x, isz_w, vmem_cap)
    if tile_l % 8 != 0 and tile_l != L:
        raise ValueError(f"tile_l={tile_l} must be a multiple of 8 (or == L)")

    l_pad = int(pl.cdiv(L, tile_l)) * tile_l
    x = x_blc
    if l_pad != L:
        # Zero rows are exactly ConvTranspose1d's implicit boundary padding;
        # the extra output rows are sliced off at the end.
        x = jnp.pad(x, ((0, 0), (0, l_pad - L), (0, 0)))
    n_tiles = l_pad // tile_l

    # One-row halos per L-tile from strided slices (2*(nT-1) rows total) plus a
    # zero boundary row — no full-array pad / extra HBM pass over x.
    zrow = jnp.zeros((B, 1, C), dtype)
    prev_rows = x[:, tile_l - 1:l_pad - 1:tile_l, :]        # (B, nT-1, C)
    next_rows = x[:, tile_l::tile_l, :]                     # (B, nT-1, C)
    halo_prev = jnp.concatenate([zrow, prev_rows], axis=1)  # x[j*TL - 1]
    halo_next = jnp.concatenate([next_rows, zrow], axis=1)  # x[(j+1)*TL]
    halo = jnp.stack([halo_prev, halo_next], axis=2)        # (B, nT, 2, C)

    # Weight blocks with no zero padding: [W1, W3, W2, W0].
    w_blk = jnp.stack(
        [weight[:, :, 1], weight[:, :, 3], weight[:, :, 2], weight[:, :, 0]],
        axis=0,
    ).astype(mxu_dtype)                                     # (4, C, C)
    b_cat = jnp.concatenate([bias, bias]).reshape(1, 2 * C).astype(jnp.float32)

    # VMEM: double-buffered x/halo/out blocks + (conservatively double-buffered)
    # resident weights/bias + headroom for internal scratch; clamped well below
    # physical VMEM (v7x = 64 MiB).
    block_bytes = (
        2 * (tile_l * C + 2 * C + tile_l * 2 * C) * isz_x
        + 2 * 4 * C * C * isz_w
        + 2 * 2 * C * 4
    )
    vmem_limit = int(min(max(block_bytes + (4 << 20), 16 << 20), vmem_cap))

    kernel = functools.partial(_upsample1d_kernel, mxu_dtype=mxu_dtype)
    out = pl.pallas_call(
        kernel,
        out_shape=jax.ShapeDtypeStruct((B, l_pad, 2 * C), dtype),
        grid=(B, n_tiles),
        in_specs=[
            pl.BlockSpec((4, C, C), lambda b, j: (0, 0, 0)),
            pl.BlockSpec((1, 2 * C), lambda b, j: (0, 0)),
            # TODO(synk): once surrounding traffic is gone, sweep
            # pipeline_mode=pl.Buffered(3) on this spec for deeper prefetch.
            pl.BlockSpec((1, tile_l, C), lambda b, j: (b, j, 0)),
            pl.BlockSpec((1, 1, 2, C), lambda b, j: (b, j, 0, 0)),
        ],
        out_specs=pl.BlockSpec((1, tile_l, 2 * C), lambda b, j: (b, j, 0)),
        compiler_params=pltpu.CompilerParams(
            dimension_semantics=("parallel", "parallel"),
            vmem_limit_bytes=vmem_limit,
        ),
    )(w_blk, b_cat, x, halo)

    # (B, l_pad, 2C) -> (B, 2*l_pad, C): row m already holds [out[2m]|out[2m+1]],
    # so this reshape involves zero data movement.
    y = out.reshape(B, 2 * l_pad, C)
    if l_pad != L:
        y = y[:, : 2 * L, :]
    return y


def upsample1d(x_ncl, weight, bias, **kwargs):
    """PyTorch-layout wrapper: x (B, C, L) -> (B, C, 2L).

    The two interface transposes here are the only wrapper HBM passes; a
    channels-last model should call `upsample1d_nlc` directly and skip both.
    """
    x = jnp.transpose(x_ncl, (0, 2, 1))
    y = upsample1d_nlc(x, weight, bias, **kwargs)
    return jnp.transpose(y, (0, 2, 1))


def upsample1d_reference(x_ncl, weight, bias):
    """Pure-JAX reference: transposed conv as lhs-dilated direct conv."""
    K = weight.shape[-1]
    w_direct = jnp.flip(jnp.transpose(weight, (1, 0, 2)), axis=-1)
    y = lax.conv_general_dilated(
        x_ncl, w_direct,
        window_strides=(1,),
        padding=[(K - 2, K - 2)],       # K - 1 - padding = 2
        lhs_dilation=(2,),
        dimension_numbers=("NCH", "OIH", "NCH"),
    )
    return y + bias.reshape(1, -1, 1)


if __name__ == "__main__":
    B, C, L = 2, 8, 16
    key = jax.random.PRNGKey(0)
    kx, kw, kb, kx2 = jax.random.split(key, 4)

    # Deterministic parameter init (PyTorch-style uniform bound).
    fan_in = C * 4
    bound = 1.0 / jnp.sqrt(jnp.float32(fan_in))
    weight = jax.random.uniform(kw, (C, C, 4), jnp.float32, -bound, bound)
    bias = jax.random.uniform(kb, (C,), jnp.float32, -bound, bound)
    x = jax.random.normal(kx, (B, C, L), jnp.float32)

    ref = upsample1d_reference(x, weight, bias)

    # Multi-tile path (grid = (B, 2), exercises cross-tile halo handling).
    out_tiled = jax.block_until_ready(upsample1d(x, weight, bias, tile_l=8))
    # Auto tile selection (single L-tile at this toy size).
    out_auto = jax.block_until_ready(upsample1d(x, weight, bias))
    # Optional bf16 MXU path (f32 accumulation) — looser tolerance.
    out_bf16 = jax.block_until_ready(
        upsample1d(x, weight, bias, tile_l=8, use_bf16_matmul=True))

    assert out_tiled.shape == (B, C, 2 * L), out_tiled.shape
    assert jnp.allclose(out_tiled, ref, atol=1e-5, rtol=1e-5), (
        float(jnp.max(jnp.abs(out_tiled - ref))))
    assert jnp.allclose(out_auto, ref, atol=1e-5, rtol=1e-5), (
        float(jnp.max(jnp.abs(out_auto - ref))))
    assert jnp.allclose(out_bf16, ref, atol=5e-2, rtol=5e-2), (
        float(jnp.max(jnp.abs(out_bf16 - ref))))

    # Ragged L (no multiple-of-8 divisor): padded-tail path.
    L2 = 12
    x2 = jax.random.normal(kx2, (B, C, L2), jnp.float32)
    ref2 = upsample1d_reference(x2, weight, bias)
    out2 = jax.block_until_ready(upsample1d(x2, weight, bias, tile_l=8))
    assert out2.shape == (B, C, 2 * L2), out2.shape
    assert jnp.allclose(out2, ref2, atol=1e-5, rtol=1e-5), (
        float(jnp.max(jnp.abs(out2 - ref2))))

    print("KERNEL_OK")
</pallas_src>

<mosaic_0001>
module attributes {stable_mosaic.version = 11 : i64} {
  func.func @_upsample1d_kernel(%arg0: i32, %arg1: i32, %arg2: memref<4x8x8xf32, #tpu.memory_space<vmem>>, %arg3: memref<1x16xf32, #tpu.memory_space<vmem>>, %arg4: memref<1x8x8xf32, #tpu.memory_space<vmem>>, %arg5: memref<1x1x2x8xf32, #tpu.memory_space<vmem>>, %arg6: memref<1x8x16xf32, #tpu.memory_space<vmem>>) attributes {dimension_semantics = [#tpu.dimension_semantics<parallel>, #tpu.dimension_semantics<parallel>], iteration_bounds = array<i64: 2, 2>, scalar_prefetch = 0 : i64, scratch_operands = 0 : i64, tpu.core_type = #tpu.core_type<tc>, window_params = [{pipeline_mode = #tpu.pipeline_mode<synchronous>, transform_indices = @transform_0, window_bounds = array<i64: 4, 8, 8>}, {pipeline_mode = #tpu.pipeline_mode<synchronous>, transform_indices = @transform_1, window_bounds = array<i64: 1, 16>}, {transform_indices = @transform_2, window_bounds = array<i64: 1, 8, 8>}, {transform_indices = @transform_3, window_bounds = array<i64: 1, 1, 2, 8>}, {transform_indices = @transform_4, window_bounds = array<i64: 1, 8, 16>}]} {
    %c0 = arith.constant 0 : index
    %c0_0 = arith.constant 0 : index
    %c0_1 = arith.constant 0 : index
    %0 = vector.load %arg4[%c0, %c0_0, %c0_1] : memref<1x8x8xf32, #tpu.memory_space<vmem>>, vector<1x8x8xf32>
    %1 = vector.shape_cast %0 : vector<1x8x8xf32> to vector<8x8xf32>
    %c0_2 = arith.constant 0 : index
    %c0_3 = arith.constant 0 : index
    %c0_4 = arith.constant 0 : index
    %c0_5 = arith.constant 0 : index
    %2 = vector.load %arg5[%c0_2, %c0_3, %c0_4, %c0_5] : memref<1x1x2x8xf32, #tpu.memory_space<vmem>>, vector<1x1x2x8xf32>
    %3 = vector.shape_cast %2 : vector<1x1x2x8xf32> to vector<2x8xf32>
    %c1_i32 = arith.constant 1 : i32
    %4 = tpu.dynamic_rotate %1 by %c1_i32 dim 0 : vector<8x8xf32>, i32 -> vector<8x8xf32>
    %c7_i32 = arith.constant 7 : i32
    %5 = tpu.dynamic_rotate %1 by %c7_i32 dim 0 : vector<8x8xf32>, i32 -> vector<8x8xf32>
    %6 = tpu.iota {dimensions = array<i32: 0>} : vector<8x1xi32>
    %c0_i32 = arith.constant 0 : i32
    %7 = vector.broadcast %c0_i32 : i32 to vector<8x1xi32>
    %8 = arith.cmpi eq, %6, %7 : vector<8x1xi32>
    %9 = vector.extract_strided_slice %3 {offsets = [0, 0], sizes = [1, 8], strides = [1, 1]} : vector<2x8xf32> to vector<1x8xf32>
    %10 = vector.shape_cast %8 : vector<8x1xi1> to vector<8x1xi1>
    %11 = vector.broadcast %10 : vector<8x1xi1> to vector<8x8xi1>
    %12 = vector.shape_cast %9 : vector<1x8xf32> to vector<1x8xf32>
    %13 = vector.broadcast %12 : vector<1x8xf32> to vector<8x8xf32>
    %14 = arith.select %11, %13, %4 : vector<8x8xi1>, vector<8x8xf32>
    %c7_i32_6 = arith.constant 7 : i32
    %15 = vector.broadcast %c7_i32_6 : i32 to vector<8x1xi32>
    %16 = arith.cmpi eq, %6, %15 : vector<8x1xi32>
    %17 = vector.extract_strided_slice %3 {offsets = [1, 0], sizes = [1, 8], strides = [1, 1]} : vector<2x8xf32> to vector<1x8xf32>
    %18 = vector.shape_cast %16 : vector<8x1xi1> to vector<8x1xi1>
    %19 = vector.broadcast %18 : vector<8x1xi1> to vector<8x8xi1>
    %20 = vector.shape_cast %17 : vector<1x8xf32> to vector<1x8xf32>
    %21 = vector.broadcast %20 : vector<1x8xf32> to vector<8x8xf32>
    %22 = arith.select %19, %21, %5 : vector<8x8xi1>, vector<8x8xf32>
    %c0_7 = arith.constant 0 : index
    %c0_8 = arith.constant 0 : index
    %c0_9 = arith.constant 0 : index
    %23 = vector.load %arg2[%c0_7, %c0_8, %c0_9] : memref<4x8x8xf32, #tpu.memory_space<vmem>>, vector<1x8x8xf32>
    %24 = vector.shape_cast %23 : vector<1x8x8xf32> to vector<8x8xf32>
    %cst = arith.constant dense<0.000000e+00> : vector<8x8xf32>
    %25 = tpu.matmul %1, %24, %cst {dimension_numbers = #tpu.dot_dimension_numbers<[1], [0], [0], [1], [0, 0, 1, 1], [], []>} : vector<8x8xf32>, vector<8x8xf32>, vector<8x8xf32> -> vector<8x8xf32>
    %c1 = arith.constant 1 : index
    %c0_10 = arith.constant 0 : index
    %c0_11 = arith.constant 0 : index
    %26 = vector.load %arg2[%c1, %c0_10, %c0_11] : memref<4x8x8xf32, #tpu.memory_space<vmem>>, vector<1x8x8xf32>
    %27 = vector.shape_cast %26 : vector<1x8x8xf32> to vector<8x8xf32>
    %cst_12 = arith.constant dense<0.000000e+00> : vector<8x8xf32>
    %28 = tpu.matmul %14, %27, %cst_12 {dimension_numbers = #tpu.dot_dimension_numbers<[1], [0], [0], [1], [0, 0, 1, 1], [], []>} : vector<8x8xf32>, vector<8x8xf32>, vector<8x8xf32> -> vector<8x8xf32>
    %29 = arith.addf %25, %28 : vector<8x8xf32>
    %c2 = arith.constant 2 : index
    %c0_13 = arith.constant 0 : index
    %c0_14 = arith.constant 0 : index
    %30 = vector.load %arg2[%c2, %c0_13, %c0_14] : memref<4x8x8xf32, #tpu.memory_space<vmem>>, vector<1x8x8xf32>
    %31 = vector.shape_cast %30 : vector<1x8x8xf32> to vector<8x8xf32>
    %cst_15 = arith.constant dense<0.000000e+00> : vector<8x8xf32>
    %32 = tpu.matmul %1, %31, %cst_15 {dimension_numbers = #tpu.dot_dimension_numbers<[1], [0], [0], [1], [0, 0, 1, 1], [], []>} : vector<8x8xf32>, vector<8x8xf32>, vector<8x8xf32> -> vector<8x8xf32>
    %c3 = arith.constant 3 : index
    %c0_16 = arith.constant 0 : index
    %c0_17 = arith.constant 0 : index
    %33 = vector.load %arg2[%c3, %c0_16, %c0_17] : memref<4x8x8xf32, #tpu.memory_space<vmem>>, vector<1x8x8xf32>
    %34 = vector.shape_cast %33 : vector<1x8x8xf32> to vector<8x8xf32>
    %cst_18 = arith.constant dense<0.000000e+00> : vector<8x8xf32>
    %35 = tpu.matmul %22, %34, %cst_18 {dimension_numbers = #tpu.dot_dimension_numbers<[1], [0], [0], [1], [0, 0, 1, 1], [], []>} : vector<8x8xf32>, vector<8x8xf32>, vector<8x8xf32> -> vector<8x8xf32>
    %36 = arith.addf %32, %35 : vector<8x8xf32>
    %37 = tpu.concatenate %29, %36 in 1 : vector<8x8xf32>, vector<8x8xf32> -> vector<8x16xf32>
    %c0_19 = arith.constant 0 : index
    %c0_20 = arith.constant 0 : index
    %38 = vector.load %arg3[%c0_19, %c0_20] : memref<1x16xf32, #tpu.memory_space<vmem>>, vector<1x16xf32>
    %39 = vector.broadcast %38 : vector<1x16xf32> to vector<8x16xf32>
    %40 = arith.addf %37, %39 : vector<8x16xf32>
    %c0_21 = arith.constant 0 : index
    %c0_22 = arith.constant 0 : index
    %c0_23 = arith.constant 0 : index
    %41 = vector.load %arg6[%c0_21, %c0_22, %c0_23] : memref<1x8x16xf32, #tpu.memory_space<vmem>>, vector<1x8x16xf32>
    %42 = vector.shape_cast %41 : vector<1x8x16xf32> to vector<8x16xf32>
    %43 = vector.shape_cast %40 : vector<8x16xf32> to vector<1x8x16xf32>
    tpu.vector_store %arg6[%c0_21, %c0_22, %c0_23], %43 {strides = array<i32>} : memref<1x8x16xf32, #tpu.memory_space<vmem>>, vector<1x8x16xf32>,
    return
  }
  func.func @transform_0(%arg0: i32, %arg1: i32) -> (i32, i32, i32) {
    %c0_i32 = arith.constant 0 : i32
    %c0_i32_0 = arith.constant 0 : i32
    %c0_i32_1 = arith.constant 0 : i32
    %c0_i32_2 = arith.constant 0 : i32
    return %c0_i32, %c0_i32_0, %c0_i32_1 : i32, i32, i32
  }
  func.func @transform_1(%arg0: i32, %arg1: i32) -> (i32, i32) {
    %c0_i32 = arith.constant 0 : i32
    %c0_i32_0 = arith.constant 0 : i32
    %c0_i32_1 = arith.constant 0 : i32
    return %c0_i32, %c0_i32_0 : i32, i32
  }
  func.func @transform_2(%arg0: i32, %arg1: i32) -> (i32, i32, i32) {
    %c0_i32 = arith.constant 0 : i32
    %c0_i32_0 = arith.constant 0 : i32
    return %arg0, %arg1, %c0_i32 : i32, i32, i32
  }
  func.func @transform_3(%arg0: i32, %arg1: i32) -> (i32, i32, i32, i32) {
    %c0_i32 = arith.constant 0 : i32
    %c0_i32_0 = arith.constant 0 : i32
    %c0_i32_1 = arith.constant 0 : i32
    return %arg0, %arg1, %c0_i32, %c0_i32_0 : i32, i32, i32, i32
  }
  func.func @transform_4(%arg0: i32, %arg1: i32) -> (i32, i32, i32) {
    %c0_i32 = arith.constant 0 : i32
    %c0_i32_0 = arith.constant 0 : i32
    return %arg0, %arg1, %c0_i32 : i32, i32, i32
  }
}

</mosaic_0001>

<llo_original>
// kernel: tpu_custom_call.1
$region0: #{tpu_custom_call.1}
  #allocation0 [shape = 'u32[]', space=smem, size = 0x4, offset = 0x4, fixed_abs, tag = 'smem constant byte address 0x4 - core index']
  #allocation1 [shape = 'u32[72,128]{1,0:T(1,128)}', space=vmem, size = 0x9000, scoped, tag = 'internal scratch']
  %s0 = inlined_call_operand.vmem [shape: f32[4,8,8], index: 0, kind: input, shape index: {}]
  %s1 = inlined_call_operand.vmem [shape: f32[1,16], index: 1, kind: input, shape index: {}]
  %s2 = inlined_call_operand.vmem [shape: f32[2,16,8], index: 2, kind: input, shape index: {}]
  %s3 = inlined_call_operand.vmem [shape: f32[2,2,2,8], index: 3, kind: input, shape index: {}]
  %s4 = inlined_call_operand.hbm [shape: f32[2,16,16], index: 4, kind: output, shape index: {}]
  %s5 = sld [smem:[#allocation0]]
  $region49: #{tpu_custom_call.1} parent=0
    _
  %s7 = ssub.s32 1, %s5
  %s8 = scalar_select 0, %s7, %s5
  $region1: #{tpu_custom_call.1} parent=0
    #allocation2 [shape = 'u8[8192]{0}', space=vmem, size = 0x2000, scoped, tag = 'output window, operand 0']
    #allocation3 [shape = 's32[2]{0}', space=sflag, size = 0x8, scoped, tag = 'scoped memory for tpu_custom_call.1']
    %9 = vsyncpa [#allocation3], 0
    %s10 = scalar_lea.sflag [#allocation3], 1
    %11 = vsyncpa %s10, 0
    loop: start=0, step=1, limit=6
    $region2: #{tpu_custom_call.1} parent=1 // loop_pre_header
      _
    $region3: #{tpu_custom_call.1} parent=1 // loop_header
      %s13 = sphi 0, %s17
      %p14 = scmp.ge.s32.totalorder %s13, 6
      %s20 = sphi 0, %s32
      %s21 = sphi 0, %s28
      %s22 = sphi 0, %s20
      %s23 = sphi 0, %s21
      %s24 = sphi 0, %s22
      %s25 = sphi 0, %s23
      %s33 = sphi 0, %s33
      %s35 = sphi 0, %s33
      %s36 = sphi 0, %s35
      %s50 = sphi 0, %s36
      %s54 = sphi 0, %s54
      %s56 = sphi 0, %s54
      %s57 = sphi 0, %s56
      %s71 = sphi 0, %s57
      %s79 = sphi 0, %s81
      %s82 = sphi 0, %s79
      %s83 = sphi 0, %s82
      %s99 = sphi 0, %s83
      %s107 = sphi 0, %s109
      %s110 = sphi 0, %s107
      %s111 = sphi 0, %s110
      %s127 = sphi 0, %s111
      %s135 = sphi 0, %s137
      %s138 = sphi 0, %s135
      %s139 = sphi 0, %s138
      %s155 = sphi 0, %s139
    $region4: #{tpu_custom_call.1} parent=1 // loop_header_branch
      %16 = sbr.rel (%p14) target = $region8
    $region5: #{tpu_custom_call.1} parent=1 // loop_body
      %s18 = ssub.s32 %s13, 1
      %s19 = ssub.s32 %s13, 2
      %s26 = sadd.s32 1, %s21
      %p27 = scmp.ge.s32.totalorder %s26, 2
      %s28 = scalar_select %p27, 0, %s26
      %s29 = sadd.s32 1, %s20
      %s30 = scalar_select %p27, %s29, %s20
      %p31 = scmp.ge.s32.totalorder %s30, 2
      %s32 = scalar_select %p31, 0, %s30
      %s34 = sadd.s32 %s33, 1
      %p37 = scmp.eq.s32.totalorder %s13, 3
      %p38 = scmp.ne.s32.totalorder %s33, %s35
      %p39 = scmp.eq.s32.totalorder %s13, 0
      %p40 = por %p38, %p39
      %p41 = scmp.ne.s32.totalorder %s33, %s35
      %p42 = scmp.eq.s32.totalorder %s18, 3
      %p43 = por %p41, %p42
      %p44 = scmp.ne.s32.totalorder %s35, %s36
      %p45 = scmp.eq.s32.totalorder %s18, 0
      %p46 = por %p44, %p45
      %p47 = scmp.ne.s32.totalorder %s35, %s36
      %p48 = scmp.eq.s32.totalorder %s19, 3
      %p49 = por %p47, %p48
      %p51 = scmp.ne.s32.totalorder %s36, %s50
      %p52 = scmp.eq.s32.totalorder %s19, 0
      %p53 = por %p51, %p52
      %s55 = sadd.s32 %s54, 1
      %p58 = scmp.eq.s32.totalorder %s13, 3
      %p59 = scmp.ne.s32.totalorder %s54, %s56
      %p60 = scmp.eq.s32.totalorder %s13, 0
      %p61 = por %p59, %p60
      %p62 = scmp.ne.s32.totalorder %s54, %s56
      %p63 = scmp.eq.s32.totalorder %s18, 3
      %p64 = por %p62, %p63
      %p65 = scmp.ne.s32.totalorder %s56, %s57
      %p66 = scmp.eq.s32.totalorder %s18, 0
      %p67 = por %p65, %p66
      %p68 = scmp.ne.s32.totalorder %s56, %s57
      %p69 = scmp.eq.s32.totalorder %s19, 3
      %p70 = por %p68, %p69
      %p72 = scmp.ne.s32.totalorder %s57, %s71
      %p73 = scmp.eq.s32.totalorder %s19, 0
      %p74 = por %p72, %p73
      %s75 = ssub.s32 %s20, %s32
      %s76 = ssub.s32 %s21, %s28
      %s77 = sor.u32 %s75, %s76
      %p78 = scmp.eq.s32.totalorder %s77, 0
      %s80 = sadd.s32 %s79, 1
      %s81 = scalar_select %p78, %s79, %s80
      %p84 = pneg %p78
      %p85 = scmp.eq.s32.totalorder %s13, 3
      %p86 = por %p84, %p85
      %p87 = scmp.ne.s32.totalorder %s79, %s82
      %p88 = scmp.eq.s32.totalorder %s13, 0
      %p89 = por %p87, %p88
      %p90 = scmp.ne.s32.totalorder %s79, %s82
      %p91 = scmp.eq.s32.totalorder %s18, 3
      %p92 = por %p90, %p91
      %p93 = scmp.ne.s32.totalorder %s82, %s83
      %p94 = scmp.eq.s32.totalorder %s18, 0
      %p95 = por %p93, %p94
      %p96 = scmp.ne.s32.totalorder %s82, %s83
      %p97 = scmp.eq.s32.totalorder %s19, 3
      %p98 = por %p96, %p97
      %p100 = scmp.ne.s32.totalorder %s83, %s99
      %p101 = scmp.eq.s32.totalorder %s19, 0
      %p102 = por %p100, %p101
      %s103 = ssub.s32 %s20, %s32
      %s104 = ssub.s32 %s21, %s28
      %s105 = sor.u32 %s103, %s104
      %p106 = scmp.eq.s32.totalorder %s105, 0
      %s108 = sadd.s32 %s107, 1
      %s109 = scalar_select %p106, %s107, %s108
      %p112 = pneg %p106
      %p113 = scmp.eq.s32.totalorder %s13, 3
      %p114 = por %p112, %p113
      %p115 = scmp.ne.s32.totalorder %s107, %s110
      %p116 = scmp.eq.s32.totalorder %s13, 0
      %p117 = por %p115, %p116
      %p118 = scmp.ne.s32.totalorder %s107, %s110
      %p119 = scmp.eq.s32.totalorder %s18, 3
      %p120 = por %p118, %p119
      %p121 = scmp.ne.s32.totalorder %s110, %s111
      %p122 = scmp.eq.s32.totalorder %s18, 0
      %p123 = por %p121, %p122
      %p124 = scmp.ne.s32.totalorder %s110, %s111
      %p125 = scmp.eq.s32.totalorder %s19, 3
      %p126 = por %p124, %p125
      %p128 = scmp.ne.s32.totalorder %s111, %s127
      %p129 = scmp.eq.s32.totalorder %s19, 0
      %p130 = por %p128, %p129
      %s131 = ssub.s32 %s20, %s32
      %s132 = ssub.s32 %s21, %s28
      %s133 = sor.u32 %s131, %s132
      %p134 = scmp.eq.s32.totalorder %s133, 0
      %s136 = sadd.s32 %s135, 1
      %s137 = scalar_select %p134, %s135, %s136
      %p140 = pneg %p134
      %p141 = scmp.eq.s32.totalorder %s13, 3
      %p142 = por %p140, %p141
      %p143 = scmp.ne.s32.totalorder %s135, %s138
      %p144 = scmp.eq.s32.totalorder %s13, 0
      %p145 = por %p143, %p144
      %p146 = scmp.ne.s32.totalorder %s135, %s138
      %p147 = scmp.eq.s32.totalorder %s18, 3
      %p148 = por %p146, %p147
      %p149 = scmp.ne.s32.totalorder %s138, %s139
      %p150 = scmp.eq.s32.totalorder %s18, 0
      %p151 = por %p149, %p150
      %p152 = scmp.ne.s32.totalorder %s138, %s139
      %p153 = scmp.eq.s32.totalorder %s19, 3
      %p154 = por %p152, %p153
      %p156 = scmp.ne.s32.totalorder %s139, %s155
      %p157 = scmp.eq.s32.totalorder %s19, 0
      %p158 = por %p156, %p157
      %p159 = scmp.le.s32.totalorder 1, %s13
      %p160 = scmp.lt.s32.totalorder %s13, 5
      %p161 = pnand %p159, %p160
      %p162 = pneg %p161
      // Predicated region
      $region9: #{tpu_custom_call.1} parent=5 // pred_check
        _
      $region10: #{tpu_custom_call.1} parent=5 // pred_check_branch
        %164 = sbr.rel (%p161) target = $region12
      $region11: #{tpu_custom_call.1} parent=5 // pred_region
        %s165 = ssub.s32 %s13, 1
        // Predicated region
        $region13: #{tpu_custom_call.1} parent=11 // pred_check
          %p166 = pneg %p46
        $region14: #{tpu_custom_call.1} parent=11 // pred_check_branch
          %168 = sbr.rel (%p166) target = $region16
        $region15: #{tpu_custom_call.1} parent=11 // pred_region
          _
        $region16: #{tpu_custom_call.1} parent=11 // pred_fallthru
          _
        // Predicated region
        $region17: #{tpu_custom_call.1} parent=11 // pred_check
          %p169 = pneg %p67
        $region18: #{tpu_custom_call.1} parent=11 // pred_check_branch
          %171 = sbr.rel (%p169) target = $region20
        $region19: #{tpu_custom_call.1} parent=11 // pred_region
          _
        $region20: #{tpu_custom_call.1} parent=11 // pred_fallthru
          _
      $region12: #{tpu_custom_call.1} parent=5 // pred_fallthru
        _
      %p172 = scmp.lt.s32.totalorder %s13, 4
      // Predicated region
      $region21: #{tpu_custom_call.1} parent=5 // pred_check
        %p173 = pneg %p172
      $region22: #{tpu_custom_call.1} parent=5 // pred_check_branch
        %175 = sbr.rel (%p173) target = $region24
      $region23: #{tpu_custom_call.1} parent=5 // pred_region
        // Predicated region
        $region25: #{tpu_custom_call.1} parent=23 // pred_check
          %p176 = pneg %p89
        $region26: #{tpu_custom_call.1} parent=23 // pred_check_branch
          %178 = sbr.rel (%p176) target = $region28
        $region27: #{tpu_custom_call.1} parent=23 // pred_region
          %p179 = scmp.lt.s32.totalorder %s20, 1
          %s180 = scalar_select %p179, %s20, 1
          %p181 = scmp.lt.s32.totalorder %s21, 1
          %s182 = scalar_select %p181, %s21, 1
          %s183 = smul.addr %s180, 2
          %s184 = sadd.s32 %s182, %s183
          %s185 = smul.addr %s184, 8
          %s186 = scalar_lea.vmem %s2, %s185
        $region28: #{tpu_custom_call.1} parent=23 // pred_fallthru
          _
        // Predicated region
        $region29: #{tpu_custom_call.1} parent=23 // pred_check
          %p187 = pneg %p117
        $region30: #{tpu_custom_call.1} parent=23 // pred_check_branch
          %189 = sbr.rel (%p187) target = $region32
        $region31: #{tpu_custom_call.1} parent=23 // pred_region
          %p190 = scmp.lt.s32.totalorder %s20, 1
          %s191 = scalar_select %p190, %s20, 1
          %p192 = scmp.lt.s32.totalorder %s21, 1
          %s193 = scalar_select %p192, %s21, 1
          %s194 = smul.addr %s191, 2
          %s195 = sadd.s32 %s193, %s194
          %s196 = smul.addr %s195, 2
          %s197 = scalar_lea.vmem %s3, %s196
        $region32: #{tpu_custom_call.1} parent=23 // pred_fallthru
          _
      $region24: #{tpu_custom_call.1} parent=5 // pred_fallthru
        _
      %p198 = scmp.le.s32.totalorder 1, %s13
      %p199 = scmp.lt.s32.totalorder %s13, 5
      %p200 = pnand %p198, %p199
      %p201 = pneg %p200
      // Predicated region
      $region33: #{tpu_custom_call.1} parent=5 // pred_check
        _
      $region34: #{tpu_custom_call.1} parent=5 // pred_check_branch
        %203 = sbr.rel (%p200) target = $region36
      $region35: #{tpu_custom_call.1} parent=5 // pred_region
        %s204 = ssub.s32 %s13, 1
        %p205 = pneg %p46
        %p206 = pneg %p43
        %p207 = pneg %p67
        %p208 = pneg %p64
        %p209 = scmp.lt.s32.totalorder %s22, 1
        %s210 = scalar_select %p209, %s22, 1
        %p211 = scmp.lt.s32.totalorder %s23, 1
        %s212 = scalar_select %p211, %s23, 1
        %s213 = smul.addr %s210, 2
        %s214 = sadd.s32 %s212, %s213
        %s215 = smul.addr %s214, 8
        %s216 = scalar_lea.vmem %s2, %s215
        %p217 = pneg %p95
        %p218 = pneg %p92
        %p219 = scmp.lt.s32.totalorder %s22, 1
        %s220 = scalar_select %p219, %s22, 1
        %p221 = scmp.lt.s32.totalorder %s23, 1
        %s222 = scalar_select %p221, %s23, 1
        %s223 = smul.addr %s220, 2
        %s224 = sadd.s32 %s222, %s223
        %s225 = smul.addr %s224, 2
        %s226 = scalar_lea.vmem %s3, %s225
        %p227 = pneg %p123
        %p228 = pneg %p120
        %p229 = pneg %p151
        %p230 = pneg %p148
        %s231 = sand.u32 %s138, 1
        %s232 = scalar_lea.sflag [#allocation3], %s231
        %s233 = sand.u32 %s138, 1
        %s234 = smul.addr %s233, 8
        %s235 = scalar_lea.vmem [#allocation2], %s234
        %p236 = scmp.lt.s32.totalorder %s22, 1
        %s237 = scalar_select %p236, %s22, 1
        %p238 = scmp.lt.s32.totalorder %s23, 1
        %s239 = scalar_select %p238, %s23, 1
        %s240 = smul.addr %s237, 2
        %s241 = sadd.s32 %s239, %s240
        %s242 = smul.addr %s241, 8
        %s243 = scalar_lea.vmem %s2, %s242
        %p244 = scmp.lt.s32.totalorder %s22, 1
        %s245 = scalar_select %p244, %s22, 1
        %p246 = scmp.lt.s32.totalorder %s23, 1
        %s247 = scalar_select %p246, %s23, 1
        %s248 = smul.addr %s245, 2
        %s249 = sadd.s32 %s247, %s248
        %s250 = smul.addr %s249, 2
        %s251 = scalar_lea.vmem %s3, %s250
        %v252 = vld [vmem:[%s243] sm:$0xff]
        %v253 = vld [vmem:[%s251] sm:$0x3]
        %v254 = vrot.slane %v252, 7
        %v255 = vrot.slane %v252, 1
        %v256 = vlaneseq
        %v257 = vshrl.u32 %v256, 7
        %vm258 = vcmp.eq.s32.totalorder %v257, 0
        %v259 = vsel %vm258, 1, 0
        %vm260 = vcmp.eq.s32.totalorder %v259, 1
        %v261 = vperm.slane %v253, 0
        %v262 = vsel %vm260, %v261, %v254
        %vm263 = vcmp.eq.s32.totalorder %v257, 7
        %v264 = vsel %vm263, 1, 0
        %vm265 = vcmp.eq.s32.totalorder %v264, 1
        %v266 = vperm.slane %v253, 1
        %v267 = vsel %vm265, %v266, %v255
        %v268 = vld [vmem:[%s0] sm:$0xff]
        %s269 = scalar_lea.vmem %s0, 8
        %v270 = vld [vmem:[%s269] sm:$0xff]
        %vm271 = vcmask 64512
        %v273 = vsel %vm271, %v262, 0
        %275 = vmatpush.msra.mxu0 0.0
        %276 = vmatpush.msra.mxu0 0.0
        %277 = vmatpush.msra.mxu0 0.0
        %278 = vmatpush.msra.mxu0 0.0
        %279 = vmatpush.msra.mxu0 0.0
        %280 = vmatpush.msra.mxu0 0.0
        %281 = vmatpush.msra.mxu0 0.0
        %282 = vmatpush.msra.mxu0 0.0
        %283 = vmatpush.msra.mxu0 0.0
        %284 = vmatpush.msra.mxu0 0.0
        %285 = vmatpush.msra.mxu0 0.0
        %286 = vmatpush.msra.mxu0 0.0
        %287 = vmatpush.msra.mxu0 0.0
        %288 = vmatpush.msra.mxu0 0.0
        %289 = vmatpush.msra.mxu0 0.0
        %290 = vmatpush.msra.mxu0 %v270
        %291 = vmatmul.f32.gmra.mxu0 %v273
        %v292 = vpop.f32.mrf.mxu0
        %v293 = vadd.f32 0.0, %v292
        %294 = vdwg.mxu0
        %v296 = vsel %vm271, %v252, 0
        %298 = vmatpush.msra.mxu0 0.0
        %299 = vmatpush.msra.mxu0 0.0
        %300 = vmatpush.msra.mxu0 0.0
        %301 = vmatpush.msra.mxu0 0.0
        %302 = vmatpush.msra.mxu0 0.0
        %303 = vmatpush.msra.mxu0 0.0
        %304 = vmatpush.msra.mxu0 0.0
        %305 = vmatpush.msra.mxu0 0.0
        %306 = vmatpush.msra.mxu0 0.0
        %307 = vmatpush.msra.mxu0 0.0
        %308 = vmatpush.msra.mxu0 0.0
        %309 = vmatpush.msra.mxu0 0.0
        %310 = vmatpush.msra.mxu0 0.0
        %311 = vmatpush.msra.mxu0 0.0
        %312 = vmatpush.msra.mxu0 0.0
        %313 = vmatpush.msra.mxu0 %v268
        %314 = vmatmul.f32.gmra.mxu0 %v296
        %v315 = vpop.f32.mrf.mxu0
        %v316 = vadd.f32 %v293, %v315
        %317 = vdwg.mxu0
        %s318 = scalar_lea.vmem %s0, 16
        %v319 = vld [vmem:[%s318] sm:$0xff]
        %s320 = scalar_lea.vmem %s0, 24
        %v321 = vld [vmem:[%s320] sm:$0xff]
        %v323 = vsel %vm271, %v267, 0
        %325 = vmatpush.msra.mxu0 0.0
        %326 = vmatpush.msra.mxu0 0.0
        %327 = vmatpush.msra.mxu0 0.0
        %328 = vmatpush.msra.mxu0 0.0
        %329 = vmatpush.msra.mxu0 0.0
        %330 = vmatpush.msra.mxu0 0.0
        %331 = vmatpush.msra.mxu0 0.0
        %332 = vmatpush.msra.mxu0 0.0
        %333 = vmatpush.msra.mxu0 0.0
        %334 = vmatpush.msra.mxu0 0.0
        %335 = vmatpush.msra.mxu0 0.0
        %336 = vmatpush.msra.mxu0 0.0
        %337 = vmatpush.msra.mxu0 0.0
        %338 = vmatpush.msra.mxu0 0.0
        %339 = vmatpush.msra.mxu0 0.0
        %340 = vmatpush.msra.mxu0 %v321
        %341 = vmatmul.f32.gmra.mxu0 %v323
        %v342 = vpop.f32.mrf.mxu0
        %v343 = vadd.f32 0.0, %v342
        %344 = vdwg.mxu0
        %345 = vmatpush.msra.mxu0 0.0
        %346 = vmatpush.msra.mxu0 0.0
        %347 = vmatpush.msra.mxu0 0.0
        %348 = vmatpush.msra.mxu0 0.0
        %349 = vmatpush.msra.mxu0 0.0
        %350 = vmatpush.msra.mxu0 0.0
        %351 = vmatpush.msra.mxu0 0.0
        %352 = vmatpush.msra.mxu0 0.0
        %353 = vmatpush.msra.mxu0 0.0
        %354 = vmatpush.msra.mxu0 0.0
        %355 = vmatpush.msra.mxu0 0.0
        %356 = vmatpush.msra.mxu0 0.0
        %357 = vmatpush.msra.mxu0 0.0
        %358 = vmatpush.msra.mxu0 0.0
        %359 = vmatpush.msra.mxu0 0.0
        %360 = vmatpush.msra.mxu0 %v319
        %361 = vmatmul.f32.gmra.mxu0 %v296
        %v362 = vpop.f32.mrf.mxu0
        %v363 = vadd.f32 %v343, %v362
        %364 = vdwg.mxu0
        %366 = vrot.lane.b32.xlu0 %v363, 8
        %v367 = vpop.permute.xlu0 %366
        %v369 = vsel %vm271, %v316, %v367
        %v370 = vld [vmem:[%s1] sm:$0x1]
        %v372 = vperm.slane %v370, 0
        %v374 = vadd.f32 %v369, %v372
        %vm375 = vcmask 130048
        %376 = vst.msk [vmem:[%s235] sm:$0xff] %vm375, %v374
        %s377 = sand.u32 %s138, 1
        %s378 = scalar_lea.sflag [#allocation3], %s377
        %s379 = sand.u32 %s138, 1
        %s380 = smul.addr %s379, 8
        %s381 = scalar_lea.vmem [#allocation2], %s380
        // Predicated region
        $region37: #{tpu_custom_call.1} parent=35 // pred_check
          %p382 = pneg %p148
        $region38: #{tpu_custom_call.1} parent=35 // pred_check_branch
          %384 = sbr.rel (%p382) target = $region40
        $region39: #{tpu_custom_call.1} parent=35 // pred_region
          %386 = vsyncadd %s378, 0
          %s387 = smul.addr %s22, 2
          %s388 = sadd.s32 %s23, %s387
          %s389 = smul.addr %s388, 8
          %s390 = scalar_lea.hbm %s4, %s389
          %s392 = sshll.u32 %s381, 4
          %s393 = int_to_ptr.vmem [resolvable:$true] %s392
          %s394 = sshll.u32 %s390, 4
          %s395 = int_to_ptr.hbm [resolvable:$true] %s394
          %397 = dma.vmem_to_hbm [thread:$0]  %s393, 128, %s395, %s378
        $region40: #{tpu_custom_call.1} parent=35 // pred_fallthru
          _
      $region36: #{tpu_custom_call.1} parent=5 // pred_fallthru
        _
      %p398 = scmp.le.s32.totalorder 2, %s13
      // Predicated region
      $region41: #{tpu_custom_call.1} parent=5 // pred_check
        %p399 = pneg %p398
      $region42: #{tpu_custom_call.1} parent=5 // pred_check_branch
        %401 = sbr.rel (%p399) target = $region44
      $region43: #{tpu_custom_call.1} parent=5 // pred_region
        %s402 = ssub.s32 %s13, 2
        // Predicated region
        $region45: #{tpu_custom_call.1} parent=43 // pred_check
          %p403 = pneg %p154
        $region46: #{tpu_custom_call.1} parent=43 // pred_check_branch
          %405 = sbr.rel (%p403) target = $region48
        $region47: #{tpu_custom_call.1} parent=43 // pred_region
          %s406 = sand.u32 %s139, 1
          %s407 = scalar_lea.sflag [#allocation3], %s406
          %s408 = sand.u32 %s139, 1
          %s409 = smul.addr %s408, 8
          %s410 = scalar_lea.vmem [#allocation2], %s409
          %412 = dma.done %s407, 128
        $region48: #{tpu_custom_call.1} parent=43 // pred_fallthru
          _
      $region44: #{tpu_custom_call.1} parent=5 // pred_fallthru
        _
    $region6: #{tpu_custom_call.1} parent=1 // loop_footer
      %s17 = sadd.s32 1, %s13
    $region7: #{tpu_custom_call.1} parent=1 // loop_footer_branch
      %12 = sbr.rel target = $region3
    $region8: #{tpu_custom_call.1} parent=1 // loop_exit
      _
    %413 = vsyncpa [#allocation3], 1
    %s414 = scalar_lea.sflag [#allocation3], 1
    %415 = vsyncpa %s414, 1

</llo_original>
